<compile_context>
chip_gen: v5e
topology: v5e:2x2
jax: 0.10.0
libtpu: 0.0.40
codegen_flags: <defaults>
</compile_context>

<pallas_src>
import functools

import jax
import jax.numpy as jnp
from jax import lax
from jax.experimental import pallas as pl
from jax.experimental.pallas import tpu as pltpu

_MIB = 1024 * 1024


def _round_up(a, m):
    return (a + m - 1) // m * m


def _cdiv(a, b):
    return (a + b - 1) // b


def _device_budgets():
    """Return (x-block budget, phase-2 out double-buffer budget, vmem limit) in bytes."""
    try:
        kind = jax.devices()[0].device_kind.lower()
    except Exception:  # pragma: no cover - conservative fallback
        kind = ""
    if "v5 lite" in kind or "v5e" in kind or "v5litepod" in kind:
        # v5e (~0.8 TB/s) is already near roofline with ~2 MiB steps.
        return 2 * _MIB, 8 * _MIB, 32 * _MIB
    if "v7" in kind:
        # v7x: 3.2 TB/s per TC but only 64 MiB physical VMEM.
        return 6 * _MIB, 16 * _MIB, 40 * _MIB
    # v6e / v5p / v4 / unknown: 128 MiB VMEM, ~1.3 TB/s -> large steps are free.
    return 8 * _MIB, 16 * _MIB, 64 * _MIB


# ----------------------------- Phase 1: pooled reduce + 1x1 conv -----------------------------

def _pool_reduce_kernel(x_ref, w_ref, y_ref, csum_ref, acc_ref, *,
                        C, H, TC, TH, n_c, n_h_local, slice_w):
    # x_ref: (1, TC, TH, W)   w_ref: (C_pad, O) or (TC, O) f32   y_ref: (1, 1, 1, O) f32
    # csum_ref: (TC, 1) f32 per-channel-tile spatial sums
    # acc_ref:  (1, O)  f32 weighted sum for this (split, batch)
    p = pl.program_id(0)            # spatial split (megacore helper)
    c = pl.program_id(2)            # channel tile
    h = pl.program_id(3)            # row tile within this split
    last_h = pl.num_programs(3) - 1

    @pl.when(jnp.logical_and(c == 0, h == 0))
    def _():
        acc_ref[...] = jnp.zeros_like(acc_ref)

    @pl.when(h == 0)
    def _():
        csum_ref[...] = jnp.zeros_like(csum_ref)

    xb = x_ref[0].astype(jnp.float32)                 # (TC, TH, W)
    rows = jnp.sum(xb, axis=-1)                       # (TC, TH) per-(channel,row) sums
    if H % TH != 0:
        # Boundary row tile: zero the rows that fall outside the real image.
        row0 = (p * n_h_local + h) * TH
        rid = row0 + lax.broadcasted_iota(jnp.int32, rows.shape, 1)
        rows = jnp.where(rid < H, rows, 0.0)
    part = jnp.sum(rows, axis=-1, keepdims=True)      # (TC, 1)
    if C % TC != 0:
        cid = c * TC + lax.broadcasted_iota(jnp.int32, part.shape, 0)
        part = jnp.where(cid < C, part, 0.0)
    csum_ref[...] += part

    @pl.when(h == last_h)
    def _():
        # One tiny MXU matvec per channel tile (not per spatial step).
        if slice_w:
            start = pl.multiple_of(c * TC, TC)
            w_tile = w_ref[pl.ds(start, TC), :]       # (TC, O) rows of resident weight
        else:
            w_tile = w_ref[...]                       # whole (TC, O) block
        acc_ref[...] += lax.dot_general(
            csum_ref[...], w_tile,
            dimension_numbers=(((0,), (0,)), ((), ())),
            preferred_element_type=jnp.float32)       # (1, O)

    @pl.when(jnp.logical_and(c == n_c - 1, h == last_h))
    def _():
        # Raw weighted spatial sum; 1/(H*W) scaling and bias are applied in phase 2.
        y_ref[0, 0] = acc_ref[...]


# ----------------------------- Phase 2: broadcast to (B, O, H, W) -----------------------------

def _pool_broadcast_kernel(p_ref, b_ref, o_ref, *, inv_hw, n_split):
    # p_ref: (n_split, 1, 1, TO) f32 partial sums    b_ref: (1, TO) f32 bias
    # o_ref: (1, TO, TH2, W) output tile
    vals = p_ref[0, 0]                                # (1, TO)
    if n_split == 2:
        vals = vals + p_ref[1, 0]
    pooled = (vals * inv_hw + b_ref[...]).astype(o_ref.dtype)   # cast O values, not O*H*W
    to, th2, w = o_ref.shape[1], o_ref.shape[2], o_ref.shape[3]
    o_ref[0] = jnp.broadcast_to(pooled.reshape(to, 1, 1), (to, th2, w))


# ----------------------------------------- Wrapper -----------------------------------------

def pool_forward(x_nchw, weight, bias, *,
                 x_block_bytes=None, out_block_bytes=None, vmem_limit_bytes=None):
    """x: (B, C, H, W); weight: (O, C); bias: (O,)  ->  (B, O, H, W) in x.dtype."""
    B, C, H, W = x_nchw.shape
    O = weight.shape[0]
    out_dtype = x_nchw.dtype
    in_bytes = jnp.dtype(x_nchw.dtype).itemsize
    out_bytes = jnp.dtype(out_dtype).itemsize
    inv_hw = 1.0 / float(H * W)

    auto_x, auto_out, auto_vmem = _device_budgets()
    x_budget = auto_x if x_block_bytes is None else x_block_bytes
    out_budget = auto_out if out_block_bytes is None else out_block_bytes
    vmem_limit = auto_vmem if vmem_limit_bytes is None else vmem_limit_bytes

    # Sublane packing for the second-to-last block dim (8 for 4B dtypes, 16 for 2B, 32 for 1B).
    sub_in = max(8, 32 // in_bytes)
    sub_out = max(8, 32 // out_bytes)
    lane_w = _round_up(W, 128)              # lanes one row occupies in VMEM

    # -------- phase-1 tiling: x stays (B, C, H, W); W is the full last dim (no padding). ----
    # Budget is counted in f32 elements: the in-kernel f32 cast of a sub-32-bit block is the
    # peak VMEM temporary.
    elems = max(sub_in * 8, x_budget // 4)
    tc_cap = max(8, elems // (sub_in * lane_w))
    if C <= tc_cap:
        TC, n_c = C, 1                      # leading block dim: no alignment needed
    else:
        n_c = _cdiv(C, tc_cap // 8 * 8)
        TC = _round_up(_cdiv(C, n_c), 8)    # multiple of 8 so the weight row-slice is aligned
        n_c = _cdiv(C, TC)
    C_pad = n_c * TC
    rows_cap = max(sub_in, elems // (TC * lane_w))
    if H <= rows_cap:
        TH, n_h = H, 1                      # block dim == full dim is always legal
    else:
        n_h = _cdiv(H, rows_cap // sub_in * sub_in)
        TH = _round_up(_cdiv(H, n_h), sub_in)
        n_h = _cdiv(H, TH)

    # Split the spatial reduction into two parallel halves so both TensorCores of a 2-core
    # chip stay busy when B alone cannot be balanced (harmless on single-core chips).
    n_split = 2 if (B % 2 == 1 and n_h >= 2 and n_h % 2 == 0) else 1
    n_h_local = n_h // n_split

    # -------- weight: transposed (C_pad, O) f32, DMA'd into VMEM exactly once. --------------
    wT = weight.astype(jnp.float32).T                      # (C, O)
    if C_pad != C:
        wT = jnp.pad(wT, ((0, C_pad - C), (0, 0)))         # tiny; keeps the VMEM slice in-bounds
    w_vmem = _round_up(C_pad, 8) * _round_up(O, 128) * 4
    w_resident = w_vmem <= 6 * _MIB
    if w_resident:
        w_spec = pl.BlockSpec((C_pad, O), lambda p, b, c, h: (0, 0))   # fetched exactly once
    else:
        # TODO(synk): very large weights fall back to per-(split,batch) re-fetch of W tiles.
        w_spec = pl.BlockSpec((TC, O), lambda p, b, c, h: (c, 0))
    slice_w = w_resident and n_c > 1

    bias_row = bias.astype(jnp.float32).reshape(1, O)

    w_traffic = C_pad * O * 4 if w_resident else n_split * B * n_c * TC * O * 4
    bytes_p1 = int(B * C * H * W * in_bytes + w_traffic + n_split * B * O * 4)
    flops_p1 = int(B * C * H * W + 2 * B * C_pad * O * n_split)

    part_sums = pl.pallas_call(
        functools.partial(_pool_reduce_kernel, C=C, H=H, TC=TC, TH=TH, n_c=n_c,
                          n_h_local=n_h_local, slice_w=slice_w),
        out_shape=jax.ShapeDtypeStruct((n_split, B, 1, O), jnp.float32),
        grid_spec=pltpu.PrefetchScalarGridSpec(
            num_scalar_prefetch=0,
            grid=(n_split, B, n_c, n_h_local),
            in_specs=[
                pl.BlockSpec((1, TC, TH, W),
                             lambda p, b, c, h: (b, c, p * n_h_local + h, 0)),
                w_spec,
            ],
            out_specs=pl.BlockSpec((1, 1, 1, O), lambda p, b, c, h: (p, b, 0, 0)),
            scratch_shapes=[pltpu.VMEM((TC, 1), jnp.float32),
                            pltpu.VMEM((1, O), jnp.float32)],
        ),
        compiler_params=pltpu.CompilerParams(
            dimension_semantics=("parallel", "parallel", "arbitrary", "arbitrary"),
            vmem_limit_bytes=vmem_limit),
        cost_estimate=pl.CostEstimate(flops=flops_p1, transcendentals=0,
                                      bytes_accessed=bytes_p1),
    )(x_nchw, wT)

    # -------- phase-2 tiling: write straight into the (B, O, H, W) output. -------------------
    per_buf = max(out_budget // 2, sub_out * lane_w * out_bytes)
    if O <= 128 or O * sub_out * lane_w * out_bytes <= per_buf:
        TO, n_o = O, 1
    else:
        TO = max(128, per_buf // (sub_out * lane_w * out_bytes) // 128 * 128)
        n_o = _cdiv(O, TO)
    rows_cap2 = per_buf // (TO * lane_w * out_bytes)
    if H <= rows_cap2:
        TH2, n_h2 = H, 1
    else:
        TH2 = max(sub_out, rows_cap2 // sub_out * sub_out)
        n_h2 = _cdiv(H, TH2)

    bytes_p2 = int(B * O * H * W * out_bytes
                   + n_split * B * n_o * TO * 4 + B * n_o * TO * 4)
    out = pl.pallas_call(
        functools.partial(_pool_broadcast_kernel, inv_hw=inv_hw, n_split=n_split),
        out_shape=jax.ShapeDtypeStruct((B, O, H, W), out_dtype),
        grid_spec=pltpu.PrefetchScalarGridSpec(
            num_scalar_prefetch=0,
            grid=(B, n_o, n_h2),
            in_specs=[
                pl.BlockSpec((n_split, 1, 1, TO), lambda b, o, h: (0, b, 0, o)),
                pl.BlockSpec((1, TO), lambda b, o, h: (0, o)),
            ],
            out_specs=pl.BlockSpec((1, TO, TH2, W), lambda b, o, h: (b, o, h, 0)),
        ),
        compiler_params=pltpu.CompilerParams(
            dimension_semantics=("parallel", "parallel", "parallel"),
            vmem_limit_bytes=vmem_limit),
        cost_estimate=pl.CostEstimate(flops=int(4 * B * O), transcendentals=0,
                                      bytes_accessed=bytes_p2),
    )(part_sums, bias_row)
    return out


if __name__ == "__main__":
    key = jax.random.PRNGKey(0)

    def reference(x, w, b):
        mean = jnp.mean(x.astype(jnp.float32), axis=(2, 3))            # (B, C)
        y = mean @ w.astype(jnp.float32).T + b.astype(jnp.float32)     # (B, O)
        return jnp.broadcast_to(y[:, :, None, None],
                                (x.shape[0], w.shape[0], x.shape[2], x.shape[3]))

    def make_params(k, C, O):
        kw, kb = jax.random.split(k)
        bound = 1.0 / (C ** 0.5)
        w = jax.random.uniform(kw, (O, C), minval=-bound, maxval=bound, dtype=jnp.float32)
        b = jax.random.uniform(kb, (O,), minval=-bound, maxval=bound, dtype=jnp.float32)
        return w, b

    k1, k2, k3 = jax.random.split(key, 3)

    # 1) Small, aligned case (auto tiling -> single block per batch item).
    B, C, O, H, W = 2, 4, 8, 16, 16
    x = jax.random.normal(k1, (B, C, H, W), dtype=jnp.float32)
    w, b = make_params(k1, C, O)
    out = pool_forward(x, w, b)
    jax.block_until_ready(out)
    assert out.shape == (B, O, H, W) and out.dtype == x.dtype
    assert jnp.allclose(out, reference(x, w, b), atol=1e-5, rtol=1e-5), "mismatch (test 1)"

    # 2) Ragged shapes with tiny forced tile budgets: exercises channel/row masking, the
    #    in-kernel weight row-slice, the 2-way spatial split and phase-2 row tiling/clipping.
    B, C, O, H, W = 1, 20, 16, 30, 16
    x = jax.random.normal(k2, (B, C, H, W), dtype=jnp.float32)
    w, b = make_params(k2, C, O)
    out = pool_forward(x, w, b, x_block_bytes=4096, out_block_bytes=8192)
    jax.block_until_ready(out)
    assert jnp.allclose(out, reference(x, w, b), atol=1e-5, rtol=1e-5), "mismatch (test 2)"

    # 3) bf16 activations with non-multiple-of-128 width / odd height.
    B, C, O, H, W = 1, 5, 8, 9, 20
    x = jax.random.normal(k3, (B, C, H, W), dtype=jnp.bfloat16)
    w, b = make_params(k3, C, O)
    out = pool_forward(x, w, b)
    jax.block_until_ready(out)
    assert out.dtype == jnp.bfloat16
    assert jnp.allclose(out.astype(jnp.float32), reference(x, w, b),
                        atol=3e-2, rtol=3e-2), "mismatch (test 3)"

    print("KERNEL_OK")
</pallas_src>

<mosaic_0001>
module attributes {stable_mosaic.version = 11 : i64} {
  func.func @_pool_reduce_kernel(%arg0: i32, %arg1: i32, %arg2: i32, %arg3: i32, %arg4: memref<1x4x16x16xf32, #tpu.memory_space<vmem>>, %arg5: memref<4x8xf32, #tpu.memory_space<vmem>>, %arg6: memref<1x1x1x8xf32, #tpu.memory_space<vmem>>, %arg7: memref<4x1xf32, #tpu.memory_space<vmem>>, %arg8: memref<1x8xf32, #tpu.memory_space<vmem>>) attributes {dimension_semantics = [#tpu.dimension_semantics<parallel>, #tpu.dimension_semantics<parallel>, #tpu.dimension_semantics<arbitrary>, #tpu.dimension_semantics<arbitrary>], iteration_bounds = array<i64: 1, 2, 1, 1>, scalar_prefetch = 0 : i64, scratch_operands = 2 : i64, tpu.core_type = #tpu.core_type<tc>, window_params = [{transform_indices = @transform_0, window_bounds = array<i64: 1, 4, 16, 16>}, {pipeline_mode = #tpu.pipeline_mode<synchronous>, transform_indices = @transform_1, window_bounds = array<i64: 4, 8>}, {transform_indices = @transform_2, window_bounds = array<i64: 1, 1, 1, 8>}]} {
    %c0_i32 = arith.constant 0 : i32
    %0 = arith.cmpi eq, %arg2, %c0_i32 : i32
    %c0_i32_0 = arith.constant 0 : i32
    %1 = arith.cmpi eq, %arg3, %c0_i32_0 : i32
    %2 = arith.andi %0, %1 : i1
    %3 = arith.extui %2 : i1 to i32
    %c0_i32_1 = arith.constant 0 : i32
    %4 = arith.cmpi ne, %3, %c0_i32_1 : i32
    scf.if %4 {
      %cst_17 = arith.constant 0.000000e+00 : f32
      %24 = vector.broadcast %cst_17 : f32 to vector<1x8xf32>
      %c0_18 = arith.constant 0 : index
      %c0_19 = arith.constant 0 : index
      %25 = vector.load %arg8[%c0_18, %c0_19] : memref<1x8xf32, #tpu.memory_space<vmem>>, vector<1x8xf32>
      tpu.vector_store %arg8[%c0_18, %c0_19], %24 {strides = array<i32>} : memref<1x8xf32, #tpu.memory_space<vmem>>, vector<1x8xf32>,
    } else {
    }
    %c0_i32_2 = arith.constant 0 : i32
    %5 = arith.cmpi eq, %arg3, %c0_i32_2 : i32
    %6 = arith.extui %5 : i1 to i32
    %c0_i32_3 = arith.constant 0 : i32
    %7 = arith.cmpi ne, %6, %c0_i32_3 : i32
    scf.if %7 {
      %cst_17 = arith.constant 0.000000e+00 : f32
      %24 = vector.broadcast %cst_17 : f32 to vector<4x1xf32>
      %c0_18 = arith.constant 0 : index
      %c0_19 = arith.constant 0 : index
      %25 = vector.load %arg7[%c0_18, %c0_19] : memref<4x1xf32, #tpu.memory_space<vmem>>, vector<4x1xf32>
      tpu.vector_store %arg7[%c0_18, %c0_19], %24 {strides = array<i32>} : memref<4x1xf32, #tpu.memory_space<vmem>>, vector<4x1xf32>,
    } else {
    }
    %c0 = arith.constant 0 : index
    %c0_4 = arith.constant 0 : index
    %c0_5 = arith.constant 0 : index
    %c0_6 = arith.constant 0 : index
    %8 = vector.load %arg4[%c0, %c0_4, %c0_5, %c0_6] : memref<1x4x16x16xf32, #tpu.memory_space<vmem>>, vector<1x4x16x16xf32>
    %9 = vector.shape_cast %8 : vector<1x4x16x16xf32> to vector<4x16x16xf32>
    %cst = arith.constant dense<0.000000e+00> : vector<4x16xf32>
    %10 = vector.multi_reduction <add>, %9, %cst [2] : vector<4x16x16xf32> to vector<4x16xf32>
    %cst_7 = arith.constant dense<0.000000e+00> : vector<4xf32>
    %11 = vector.multi_reduction <add>, %10, %cst_7 [1] : vector<4x16xf32> to vector<4xf32>
    %12 = vector.shape_cast %11 : vector<4xf32> to vector<4x1xf32>
    %c0_8 = arith.constant 0 : index
    %c0_9 = arith.constant 0 : index
    %13 = vector.load %arg7[%c0_8, %c0_9] : memref<4x1xf32, #tpu.memory_space<vmem>>, vector<4x1xf32>
    %14 = arith.addf %13, %12 : vector<4x1xf32>
    %c0_10 = arith.constant 0 : index
    %c0_11 = arith.constant 0 : index
    %15 = vector.load %arg7[%c0_10, %c0_11] : memref<4x1xf32, #tpu.memory_space<vmem>>, vector<4x1xf32>
    tpu.vector_store %arg7[%c0_10, %c0_11], %14 {strides = array<i32>} : memref<4x1xf32, #tpu.memory_space<vmem>>, vector<4x1xf32>,
    %c0_i32_12 = arith.constant 0 : i32
    %16 = arith.cmpi eq, %arg3, %c0_i32_12 : i32
    %17 = arith.extui %16 : i1 to i32
    %c0_i32_13 = arith.constant 0 : i32
    %18 = arith.cmpi ne, %17, %c0_i32_13 : i32
    scf.if %18 {
      %c0_17 = arith.constant 0 : index
      %c0_18 = arith.constant 0 : index
      %24 = vector.load %arg5[%c0_17, %c0_18] : memref<4x8xf32, #tpu.memory_space<vmem>>, vector<4x8xf32>
      %c0_19 = arith.constant 0 : index
      %c0_20 = arith.constant 0 : index
      %25 = vector.load %arg8[%c0_19, %c0_20] : memref<1x8xf32, #tpu.memory_space<vmem>>, vector<1x8xf32>
      %c0_21 = arith.constant 0 : index
      %c0_22 = arith.constant 0 : index
      %26 = vector.load %arg7[%c0_21, %c0_22] : memref<4x1xf32, #tpu.memory_space<vmem>>, vector<4x1xf32>
      %cst_23 = arith.constant dense<0.000000e+00> : vector<1x8xf32>
      %27 = tpu.matmul %26, %24, %cst_23 {dimension_numbers = #tpu.dot_dimension_numbers<[0], [0], [1], [1], [0, 1, 1, 1], [], []>} : vector<4x1xf32>, vector<4x8xf32>, vector<1x8xf32> -> vector<1x8xf32>
      %28 = arith.addf %25, %27 : vector<1x8xf32>
      %c0_24 = arith.constant 0 : index
      %c0_25 = arith.constant 0 : index
      %29 = vector.load %arg8[%c0_24, %c0_25] : memref<1x8xf32, #tpu.memory_space<vmem>>, vector<1x8xf32>
      tpu.vector_store %arg8[%c0_24, %c0_25], %28 {strides = array<i32>} : memref<1x8xf32, #tpu.memory_space<vmem>>, vector<1x8xf32>,
    } else {
    }
    %c0_i32_14 = arith.constant 0 : i32
    %19 = arith.cmpi eq, %arg2, %c0_i32_14 : i32
    %c0_i32_15 = arith.constant 0 : i32
    %20 = arith.cmpi eq, %arg3, %c0_i32_15 : i32
    %21 = arith.andi %19, %20 : i1
    %22 = arith.extui %21 : i1 to i32
    %c0_i32_16 = arith.constant 0 : i32
    %23 = arith.cmpi ne, %22, %c0_i32_16 : i32
    scf.if %23 {
      %c0_17 = arith.constant 0 : index
      %c0_18 = arith.constant 0 : index
      %24 = vector.load %arg8[%c0_17, %c0_18] : memref<1x8xf32, #tpu.memory_space<vmem>>, vector<1x8xf32>
      %c0_19 = arith.constant 0 : index
      %c0_20 = arith.constant 0 : index
      %c0_21 = arith.constant 0 : index
      %c0_22 = arith.constant 0 : index
      %25 = vector.load %arg6[%c0_19, %c0_20, %c0_21, %c0_22] : memref<1x1x1x8xf32, #tpu.memory_space<vmem>>, vector<1x1x1x8xf32>
      %26 = vector.shape_cast %25 : vector<1x1x1x8xf32> to vector<1x8xf32>
      %27 = vector.shape_cast %24 : vector<1x8xf32> to vector<1x1x1x8xf32>
      tpu.vector_store %arg6[%c0_19, %c0_20, %c0_21, %c0_22], %27 {strides = array<i32>} : memref<1x1x1x8xf32, #tpu.memory_space<vmem>>, vector<1x1x1x8xf32>,
    } else {
    }
    return
  }
  func.func @transform_0(%arg0: i32, %arg1: i32, %arg2: i32, %arg3: i32) -> (i32, i32, i32, i32) {
    %c1_i32 = arith.constant 1 : i32
    %0 = arith.muli %arg0, %c1_i32 : i32
    %1 = arith.addi %0, %arg3 : i32
    %c0_i32 = arith.constant 0 : i32
    %c0_i32_0 = arith.constant 0 : i32
    return %arg1, %arg2, %1, %c0_i32 : i32, i32, i32, i32
  }
  func.func @transform_1(%arg0: i32, %arg1: i32, %arg2: i32, %arg3: i32) -> (i32, i32) {
    %c0_i32 = arith.constant 0 : i32
    %c0_i32_0 = arith.constant 0 : i32
    %c0_i32_1 = arith.constant 0 : i32
    return %c0_i32, %c0_i32_0 : i32, i32
  }
  func.func @transform_2(%arg0: i32, %arg1: i32, %arg2: i32, %arg3: i32) -> (i32, i32, i32, i32) {
    %c0_i32 = arith.constant 0 : i32
    %c0_i32_0 = arith.constant 0 : i32
    %c0_i32_1 = arith.constant 0 : i32
    return %arg0, %arg1, %c0_i32, %c0_i32_0 : i32, i32, i32, i32
  }
}

</mosaic_0001>

<llo_original>
// kernel: tpu_custom_call.1
$region0: #{tpu_custom_call.1}
  #allocation0 [shape = 'u32[]', space=smem, size = 0x4, offset = 0x4, fixed_abs, tag = 'smem constant byte address 0x4 - core index']
  #allocation1 [shape = 'u32[72,128]{1,0:T(1,128)}', space=vmem, size = 0x9000, scoped, tag = 'internal scratch']
  #allocation2 [shape = 'f32[4,1]{1,0:T(4,128)}', space=vmem, size = 0x800, scoped, tag = 'scratch operand']
  #allocation3 [shape = 'f32[1,8]{1,0:T(1,128)}', space=vmem, size = 0x200, scoped, tag = 'scratch operand']
  %s0 = inlined_call_operand.hbm [shape: f32[2,4,16,16], index: 0, kind: input, shape index: {}]
  %s1 = inlined_call_operand.hbm [shape: f32[4,8], index: 1, kind: input, shape index: {}]
  %s2 = inlined_call_operand.hbm [shape: f32[1,2,1,8], index: 2, kind: output, shape index: {}]
  %s3 = sld [smem:[#allocation0]]
  $region65: #{tpu_custom_call.1} parent=0
    _
  %s5 = ssub.s32 1, %s3
  %s6 = scalar_select 0, %s5, %s3
  $region1: #{tpu_custom_call.1} parent=0
    #allocation4 [shape = 'u8[65536]{0}', space=vmem, size = 0x10000, scoped, tag = 'input window, operand 0']
    #allocation5 [shape = 's32[2]{0}', space=sflag, size = 0x8, scoped, tag = 'scoped memory for tpu_custom_call.1']
    #allocation6 [shape = 's32[2]{0}', space=sflag, size = 0x8, scoped, tag = 'scoped memory for tpu_custom_call.1']
    #allocation7 [shape = 'u8[2048]{0}', space=vmem, size = 0x800, scoped, tag = 'input window, operand 1, single buffered']
    #allocation8 [shape = 's32[1]{0}', space=sflag, size = 0x4, scoped, tag = 'scoped memory for tpu_custom_call.1']
    #allocation9 [shape = 'u8[1024]{0}', space=vmem, size = 0x400, scoped, tag = 'output window, operand 0']
    %7 = vsyncpa [#allocation5], 0
    %s8 = scalar_lea.sflag [#allocation5], 1
    %9 = vsyncpa %s8, 0
    %10 = vsyncpa [#allocation8], 0
    %11 = vsyncpa [#allocation6], 0
    %s12 = scalar_lea.sflag [#allocation6], 1
    %13 = vsyncpa %s12, 0
    loop: start=0, step=1, limit=4
    $region2: #{tpu_custom_call.1} parent=1 // loop_pre_header
      _
    $region3: #{tpu_custom_call.1} parent=1 // loop_header
      %s15 = sphi 0, %s19
      %p16 = scmp.ge.s32.totalorder %s15, 4
      %s22 = sphi 0, %s48
      %s23 = sphi 0, %s44
      %s24 = sphi 0, %s40
      %s25 = sphi 0, %s36
      %s26 = sphi 0, %s22
      %s27 = sphi 0, %s23
      %s28 = sphi 0, %s24
      %s29 = sphi 0, %s25
      %s30 = sphi 0, %s26
      %s31 = sphi 0, %s27
      %s32 = sphi 0, %s28
      %s33 = sphi 0, %s29
      %s57 = sphi 0, %s59
      %s60 = sphi 0, %s57
      %s61 = sphi 0, %s60
      %s77 = sphi 0, %s61
      %s81 = sphi 0, %s81
      %s83 = sphi 0, %s81
      %s84 = sphi 0, %s83
      %s98 = sphi 0, %s84
      %s106 = sphi 0, %s108
      %s109 = sphi 0, %s106
      %s110 = sphi 0, %s109
      %s126 = sphi 0, %s110
    $region4: #{tpu_custom_call.1} parent=1 // loop_header_branch
      %18 = sbr.rel (%p16) target = $region8
    $region5: #{tpu_custom_call.1} parent=1 // loop_body
      %s20 = ssub.s32 %s15, 1
      %s21 = ssub.s32 %s15, 2
      %s34 = sadd.s32 1, %s25
      %p35 = scmp.ge.s32.totalorder %s34, 1
      %s36 = scalar_select %p35, 0, %s34
      %s37 = sadd.s32 1, %s24
      %s38 = scalar_select %p35, %s37, %s24
      %p39 = scmp.ge.s32.totalorder %s38, 1
      %s40 = scalar_select %p39, 0, %s38
      %s41 = sadd.s32 1, %s23
      %s42 = scalar_select %p39, %s41, %s23
      %p43 = scmp.ge.s32.totalorder %s42, 2
      %s44 = scalar_select %p43, 0, %s42
      %s45 = sadd.s32 1, %s22
      %s46 = scalar_select %p43, %s45, %s22
      %p47 = scmp.ge.s32.totalorder %s46, 1
      %s48 = scalar_select %p47, 0, %s46
      %s49 = sadd.s32 %s22, %s25
      %s50 = sadd.s32 %s48, %s36
      %s51 = ssub.s32 %s23, %s44
      %s52 = ssub.s32 %s24, %s40
      %s53 = sor.u32 %s51, %s52
      %s54 = ssub.s32 %s49, %s50
      %s55 = sor.u32 %s53, %s54
      %p56 = scmp.eq.s32.totalorder %s55, 0
      %s58 = sadd.s32 %s57, 1
      %s59 = scalar_select %p56, %s57, %s58
      %p62 = pneg %p56
      %p63 = scmp.eq.s32.totalorder %s15, 1
      %p64 = por %p62, %p63
      %p65 = scmp.ne.s32.totalorder %s57, %s60
      %p66 = scmp.eq.s32.totalorder %s15, 0
      %p67 = por %p65, %p66
      %p68 = scmp.ne.s32.totalorder %s57, %s60
      %p69 = scmp.eq.s32.totalorder %s20, 1
      %p70 = por %p68, %p69
      %p71 = scmp.ne.s32.totalorder %s60, %s61
      %p72 = scmp.eq.s32.totalorder %s20, 0
      %p73 = por %p71, %p72
      %p74 = scmp.ne.s32.totalorder %s60, %s61
      %p75 = scmp.eq.s32.totalorder %s21, 1
      %p76 = por %p74, %p75
      %p78 = scmp.ne.s32.totalorder %s61, %s77
      %p79 = scmp.eq.s32.totalorder %s21, 0
      %p80 = por %p78, %p79
      %s82 = sadd.s32 %s81, 1
      %p85 = scmp.eq.s32.totalorder %s15, 1
      %p86 = scmp.ne.s32.totalorder %s81, %s83
      %p87 = scmp.eq.s32.totalorder %s15, 0
      %p88 = por %p86, %p87
      %p89 = scmp.ne.s32.totalorder %s81, %s83
      %p90 = scmp.eq.s32.totalorder %s20, 1
      %p91 = por %p89, %p90
      %p92 = scmp.ne.s32.totalorder %s83, %s84
      %p93 = scmp.eq.s32.totalorder %s20, 0
      %p94 = por %p92, %p93
      %p95 = scmp.ne.s32.totalorder %s83, %s84
      %p96 = scmp.eq.s32.totalorder %s21, 1
      %p97 = por %p95, %p96
      %p99 = scmp.ne.s32.totalorder %s84, %s98
      %p100 = scmp.eq.s32.totalorder %s21, 0
      %p101 = por %p99, %p100
      %s102 = ssub.s32 %s22, %s48
      %s103 = ssub.s32 %s23, %s44
      %s104 = sor.u32 %s102, %s103
      %p105 = scmp.eq.s32.totalorder %s104, 0
      %s107 = sadd.s32 %s106, 1
      %s108 = scalar_select %p105, %s106, %s107
      %p111 = pneg %p105
      %p112 = scmp.eq.s32.totalorder %s15, 1
      %p113 = por %p111, %p112
      %p114 = scmp.ne.s32.totalorder %s106, %s109
      %p115 = scmp.eq.s32.totalorder %s15, 0
      %p116 = por %p114, %p115
      %p117 = scmp.ne.s32.totalorder %s106, %s109
      %p118 = scmp.eq.s32.totalorder %s20, 1
      %p119 = por %p117, %p118
      %p120 = scmp.ne.s32.totalorder %s109, %s110
      %p121 = scmp.eq.s32.totalorder %s20, 0
      %p122 = por %p120, %p121
      %p123 = scmp.ne.s32.totalorder %s109, %s110
      %p124 = scmp.eq.s32.totalorder %s21, 1
      %p125 = por %p123, %p124
      %p127 = scmp.ne.s32.totalorder %s110, %s126
      %p128 = scmp.eq.s32.totalorder %s21, 0
      %p129 = por %p127, %p128
      %p130 = scmp.le.s32.totalorder 1, %s15
      %p131 = scmp.lt.s32.totalorder %s15, 3
      %p132 = pnand %p130, %p131
      %p133 = pneg %p132
      // Predicated region
      $region9: #{tpu_custom_call.1} parent=5 // pred_check
        _
      $region10: #{tpu_custom_call.1} parent=5 // pred_check_branch
        %135 = sbr.rel (%p132) target = $region12
      $region11: #{tpu_custom_call.1} parent=5 // pred_region
        %s136 = ssub.s32 %s15, 1
        // Predicated region
        $region13: #{tpu_custom_call.1} parent=11 // pred_check
          %p137 = pneg %p94
        $region14: #{tpu_custom_call.1} parent=11 // pred_check_branch
          %139 = sbr.rel (%p137) target = $region16
        $region15: #{tpu_custom_call.1} parent=11 // pred_region
          %141 = vsyncadd [#allocation8], 0
          %s143 = sshll.u32 %s1, 4
          %s144 = int_to_ptr.hbm [resolvable:$true] %s143
          %s145 = sshll.u32 [#allocation7], 4
          %s146 = int_to_ptr.vmem [resolvable:$true] %s145
          %148 = dma.hbm_to_vmem [thread:$0]  %s144, 64, %s146, [#allocation8]
        $region16: #{tpu_custom_call.1} parent=11 // pred_fallthru
          _
      $region12: #{tpu_custom_call.1} parent=5 // pred_fallthru
        _
      %p149 = scmp.lt.s32.totalorder %s15, 2
      // Predicated region
      $region17: #{tpu_custom_call.1} parent=5 // pred_check
        %p150 = pneg %p149
      $region18: #{tpu_custom_call.1} parent=5 // pred_check_branch
        %152 = sbr.rel (%p150) target = $region20
      $region19: #{tpu_custom_call.1} parent=5 // pred_region
        // Predicated region
        $region21: #{tpu_custom_call.1} parent=19 // pred_check
          %p153 = pneg %p67
        $region22: #{tpu_custom_call.1} parent=19 // pred_check_branch
          %155 = sbr.rel (%p153) target = $region24
        $region23: #{tpu_custom_call.1} parent=19 // pred_region
          %s156 = sand.u32 %s57, 1
          %s157 = scalar_lea.sflag [#allocation5], %s156
          %s158 = sand.u32 %s57, 1
          %s159 = smul.addr %s158, 64
          %s160 = scalar_lea.vmem [#allocation4], %s159
          %s161 = sadd.s32 %s22, %s25
          %s162 = smul.u32 4, %s24
          %s163 = smul.u32 2, %s161
          %165 = vsyncadd %s157, 0
          %s166 = smul.addr %s162, 2
          %s167 = sadd.s32 %s163, %s166
          %s168 = smul.addr %s23, 8
          %s169 = sadd.s32 %s167, %s168
          %s170 = smul.addr %s169, 8
          %s171 = scalar_lea.hbm %s0, %s170
          %s172 = sshll.u32 %s171, 4
          %s173 = int_to_ptr.hbm [resolvable:$true] %s172
          %s174 = sshll.u32 %s160, 4
          %s175 = int_to_ptr.vmem [resolvable:$true] %s174
          %180 = dma.hbm_to_vmem [thread:$0]  %s173, 1024, %s175, %s157, 128, 128, 8
        $region24: #{tpu_custom_call.1} parent=19 // pred_fallthru
          _
      $region20: #{tpu_custom_call.1} parent=5 // pred_fallthru
        _
      %p181 = scmp.le.s32.totalorder 1, %s15
      %p182 = scmp.lt.s32.totalorder %s15, 3
      %p183 = pnand %p181, %p182
      %p184 = pneg %p183
      // Predicated region
      $region25: #{tpu_custom_call.1} parent=5 // pred_check
        _
      $region26: #{tpu_custom_call.1} parent=5 // pred_check_branch
        %186 = sbr.rel (%p183) target = $region28
      $region27: #{tpu_custom_call.1} parent=5 // pred_region
        %s187 = ssub.s32 %s15, 1
        %s188 = sand.u32 %s60, 1
        %s189 = scalar_lea.sflag [#allocation5], %s188
        %s190 = sand.u32 %s60, 1
        %s191 = smul.addr %s190, 64
        %s192 = scalar_lea.vmem [#allocation4], %s191
        // Predicated region
        $region29: #{tpu_custom_call.1} parent=27 // pred_check
          %p193 = pneg %p73
        $region30: #{tpu_custom_call.1} parent=27 // pred_check_branch
          %195 = sbr.rel (%p193) target = $region32
        $region31: #{tpu_custom_call.1} parent=27 // pred_region
          %197 = dma.done %s189, 1024
        $region32: #{tpu_custom_call.1} parent=27 // pred_fallthru
          _
        // Predicated region
        $region33: #{tpu_custom_call.1} parent=27 // pred_check
          %p198 = pneg %p94
        $region34: #{tpu_custom_call.1} parent=27 // pred_check_branch
          %200 = sbr.rel (%p198) target = $region36
        $region35: #{tpu_custom_call.1} parent=27 // pred_region
          %202 = dma.done [#allocation8], 64
        $region36: #{tpu_custom_call.1} parent=27 // pred_fallthru
          _
        %s203 = sand.u32 %s60, 1
        %s204 = scalar_lea.sflag [#allocation5], %s203
        %s205 = sand.u32 %s60, 1
        %s206 = smul.addr %s205, 64
        %s207 = scalar_lea.vmem [#allocation4], %s206
        %p208 = pneg %p73
        %p209 = pneg %p70
        %p210 = pneg %p94
        %p211 = pneg %p91
        %p212 = pneg %p122
        %p213 = pneg %p119
        %s214 = sand.u32 %s109, 1
        %s215 = scalar_lea.sflag [#allocation6], %s214
        %s216 = sand.u32 %s109, 1
        %s217 = scalar_lea.vmem [#allocation9], %s216
        %s218 = sadd.s32 %s26, %s29
        %s219 = smul.u32 4, %s28
        %s220 = smul.u32 2, %s218
        %p221 = scmp.eq.s32.totalorder %s28, 0
        %p222 = scmp.eq.s32.totalorder %s29, 0
        %p223 = pnand %p221, %p222
        %p224 = pneg %p223
        // Predicated region
        $region37: #{tpu_custom_call.1} parent=27 // pred_check
          _
        $region38: #{tpu_custom_call.1} parent=27 // pred_check_branch
          %226 = sbr.rel (%p223) target = $region40
        $region39: #{tpu_custom_call.1} parent=27 // pred_region
          %vm227 = vcmask 57344
          %228 = vst.msk [vmem:[#allocation3] sm:$0x1] %vm227, 0.0
        $region40: #{tpu_custom_call.1} parent=27 // pred_fallthru
          _
        // Predicated region
        $region41: #{tpu_custom_call.1} parent=27 // pred_check
          %p229 = pneg %p222
        $region42: #{tpu_custom_call.1} parent=27 // pred_check_branch
          %231 = sbr.rel (%p229) target = $region44
        $region43: #{tpu_custom_call.1} parent=27 // pred_region
          %vm232 = vcmask 3072
          %233 = vst.msk [vmem:[#allocation2] sm:$0xf] %vm232, 0.0
        $region44: #{tpu_custom_call.1} parent=27 // pred_fallthru
          _
        %v234 = vld [vmem:[%s192] sm:$0xff]
        %v235 = vld [vmem:[%s192 + $0x8] sm:$0xff]
        %v236 = vld [vmem:[%s192 + $0x10] sm:$0xff]
        %v237 = vld [vmem:[%s192 + $0x18] sm:$0xff]
        %v238 = vld [vmem:[%s192 + $0x20] sm:$0xff]
        %v239 = vld [vmem:[%s192 + $0x28] sm:$0xff]
        %v240 = vld [vmem:[%s192 + $0x30] sm:$0xff]
        %v241 = vld [vmem:[%s192 + $0x38] sm:$0xff]
        %vm242 = vcmask 130048
        %v243 = vsel %vm242, %v234, 0.0
        %244 = vadd.xlane.f32.xlu0 %v243
        %v245 = vpop.xlane.xlu0 %244
        %v246 = vsel %vm242, %v235, 0.0
        %247 = vadd.xlane.f32.xlu0 %v246
        %v248 = vpop.xlane.xlu0 %247
        %v249 = vsel %vm242, %v236, 0.0
        %250 = vadd.xlane.f32.xlu0 %v249
        %v251 = vpop.xlane.xlu0 %250
        %v252 = vsel %vm242, %v237, 0.0
        %253 = vadd.xlane.f32.xlu0 %v252
        %v254 = vpop.xlane.xlu0 %253
        %v255 = vsel %vm242, %v238, 0.0
        %256 = vadd.xlane.f32.xlu0 %v255
        %v257 = vpop.xlane.xlu0 %256
        %v258 = vsel %vm242, %v239, 0.0
        %259 = vadd.xlane.f32.xlu0 %v258
        %v260 = vpop.xlane.xlu0 %259
        %v261 = vsel %vm242, %v240, 0.0
        %262 = vadd.xlane.f32.xlu0 %v261
        %v263 = vpop.xlane.xlu0 %262
        %v264 = vsel %vm242, %v241, 0.0
        %265 = vadd.xlane.f32.xlu0 %v264
        %v266 = vpop.xlane.xlu0 %265
        %v275 = vlaneseq
        %v276 = vand.u32 %v275, 127
        %v277 = vperm.slane %v245, %v276
        %v278 = vadd.s32 %v276, 4294967288
        %v279 = vperm.slane %v248, %v278
        %vm280 = vcmask 130112
        %v281 = vsel %vm280, %v279, %v277
        %v282 = vperm.slane %v251, %v276
        %v283 = vperm.slane %v254, %v278
        %v284 = vsel %vm280, %v283, %v282
        %v285 = vperm.slane %v257, %v276
        %v286 = vperm.slane %v260, %v278
        %v287 = vsel %vm280, %v286, %v285
        %v288 = vperm.slane %v263, %v276
        %v289 = vperm.slane %v266, %v278
        %v290 = vsel %vm280, %v289, %v288
        %vm291 = vcmask 1041409
        %v292 = vsel %vm291, %v284, %v281
        %vm293 = vcmask 1042434
        %v294 = vsel %vm293, %v287, %v292
        %vm295 = vcmask 1043459
        %v296 = vsel %vm295, %v290, %v294
        %vm298 = vcmask 125952
        %v299 = vsel %vm298, %v296, 0.0
        %300 = vadd.xlane.f32.xlu0 %v299
        %v301 = vpop.xlane.xlu0 %300
        %v302 = vld [vmem:[#allocation2] sm:$0xf]
        %v303 = vadd.f32 %v302, %v301
        %vm304 = vcmask 3072
        %305 = vst.msk [vmem:[#allocation2] sm:$0xf] %vm304, %v303
        // Predicated region
        $region45: #{tpu_custom_call.1} parent=27 // pred_check
          %p306 = pneg %p222
        $region46: #{tpu_custom_call.1} parent=27 // pred_check_branch
          %308 = sbr.rel (%p306) target = $region48
        $region47: #{tpu_custom_call.1} parent=27 // pred_region
          %v309 = vld [vmem:[#allocation7] sm:$0xf]
          %v310 = vld [vmem:[#allocation3] sm:$0x1]
          %v311 = vld [vmem:[#allocation2] sm:$0xf]
          %312 = vxpose.xlu0.b32.start [1/16] %v311, 128
          %313 = vxpose.xlu0.b32.cont [2/16] 0.0, 128
          %314 = vxpose.xlu0.b32.cont [3/16] 0.0, 128
          %315 = vxpose.xlu0.b32.cont [4/16] 0.0, 128
          %316 = vxpose.xlu0.b32.cont [5/16] 0.0, 128
          %317 = vxpose.xlu0.b32.cont [6/16] 0.0, 128
          %318 = vxpose.xlu0.b32.cont [7/16] 0.0, 128
          %319 = vxpose.xlu0.b32.cont [8/16] 0.0, 128
          %320 = vxpose.xlu0.b32.cont [9/16] 0.0, 128
          %321 = vxpose.xlu0.b32.cont [10/16] 0.0, 128
          %322 = vxpose.xlu0.b32.cont [11/16] 0.0, 128
          %323 = vxpose.xlu0.b32.cont [12/16] 0.0, 128
          %324 = vxpose.xlu0.b32.cont [13/16] 0.0, 128
          %325 = vxpose.xlu0.b32.cont [14/16] 0.0, 128
          %326 = vxpose.xlu0.b32.cont [15/16] 0.0, 128
          %327 = vxpose.xlu0.b32.end [16/16] 0.0, 128
          %v328 = vpop.trf.xlu0
          %v329 = vpop.trf.xlu0
          %v330 = vpop.trf.xlu0
          %v331 = vpop.trf.xlu0
          %v332 = vpop.trf.xlu0
          %v333 = vpop.trf.xlu0
          %v334 = vpop.trf.xlu0
          %v335 = vpop.trf.xlu0
          %v336 = vpop.trf.xlu0
          %v337 = vpop.trf.xlu0
          %v338 = vpop.trf.xlu0
          %v339 = vpop.trf.xlu0
          %v340 = vpop.trf.xlu0
          %v341 = vpop.trf.xlu0
          %v342 = vpop.trf.xlu0
          %v343 = vpop.trf.xlu0
          %vm344 = vcmask 31744
          %v346 = vsel %vm344, %v328, 0
          %vm348 = vcmask 1043456
          %v350 = vsel %vm348, %v309, 0
          %352 = vmatpush.msra.mxu0 0.0
          %353 = vmatpush.msra.mxu0 0.0
          %354 = vmatpush.msra.mxu0 0.0
          %355 = vmatpush.msra.mxu0 0.0
          %356 = vmatpush.msra.mxu0 0.0
          %357 = vmatpush.msra.mxu0 0.0
          %358 = vmatpush.msra.mxu0 0.0
          %359 = vmatpush.msra.mxu0 0.0
          %360 = vmatpush.msra.mxu0 0.0
          %361 = vmatpush.msra.mxu0 0.0
          %362 = vmatpush.msra.mxu0 0.0
          %363 = vmatpush.msra.mxu0 0.0
          %364 = vmatpush.msra.mxu0 0.0
          %365 = vmatpush.msra.mxu0 0.0
          %366 = vmatpush.msra.mxu0 0.0
          %367 = vmatpush.msra.mxu0 %v350
          %368 = vmatmul.f32.gmra.mxu0 %v346
          %v369 = vpop.f32.mrf.mxu0
          %v370 = vadd.f32 0.0, %v369
          %371 = vdwg.mxu0
          %v372 = vadd.f32 %v310, %v370
          %vm373 = vcmask 57344
          %374 = vst.msk [vmem:[#allocation3] sm:$0x1] %vm373, %v372
        $region48: #{tpu_custom_call.1} parent=27 // pred_fallthru
          _
        // Predicated region
        $region49: #{tpu_custom_call.1} parent=27 // pred_check
          _
        $region50: #{tpu_custom_call.1} parent=27 // pred_check_branch
          %376 = sbr.rel (%p223) target = $region52
        $region51: #{tpu_custom_call.1} parent=27 // pred_region
          %v377 = vld [vmem:[#allocation3] sm:$0x1]
          %vm378 = vcmask 57344
          %379 = vst.msk [vmem:[%s217] sm:$0x1] %vm378, %v377
        $region52: #{tpu_custom_call.1} parent=27 // pred_fallthru
          _
        %s380 = sand.u32 %s109, 1
        %s381 = scalar_lea.sflag [#allocation6], %s380
        %s382 = sand.u32 %s109, 1
        %s383 = scalar_lea.vmem [#allocation9], %s382
        // Predicated region
        $region53: #{tpu_custom_call.1} parent=27 // pred_check
          %p384 = pneg %p119
        $region54: #{tpu_custom_call.1} parent=27 // pred_check_branch
          %386 = sbr.rel (%p384) target = $region56
        $region55: #{tpu_custom_call.1} parent=27 // pred_region
          %388 = vsyncadd %s381, 0
          %s389 = smul.addr %s26, 2
          %s390 = sadd.s32 %s27, %s389
          %s391 = scalar_lea.hbm %s2, %s390
          %s393 = sshll.u32 %s383, 4
          %s394 = int_to_ptr.vmem [resolvable:$true] %s393
          %s395 = sshll.u32 %s391, 4
          %s396 = int_to_ptr.hbm [resolvable:$true] %s395
          %398 = dma.vmem_to_hbm [thread:$0]  %s394, 16, %s396, %s381
        $region56: #{tpu_custom_call.1} parent=27 // pred_fallthru
          _
      $region28: #{tpu_custom_call.1} parent=5 // pred_fallthru
        _
      %p399 = scmp.le.s32.totalorder 2, %s15
      // Predicated region
      $region57: #{tpu_custom_call.1} parent=5 // pred_check
        %p400 = pneg %p399
      $region58: #{tpu_custom_call.1} parent=5 // pred_check_branch
        %402 = sbr.rel (%p400) target = $region60
      $region59: #{tpu_custom_call.1} parent=5 // pred_region
        %s403 = ssub.s32 %s15, 2
        // Predicated region
        $region61: #{tpu_custom_call.1} parent=59 // pred_check
          %p404 = pneg %p125
        $region62: #{tpu_custom_call.1} parent=59 // pred_check_branch
          %406 = sbr.rel (%p404) target = $region64
        $region63: #{tpu_custom_call.1} parent=59 // pred_region
          %s407 = sand.u32 %s110, 1
          %s408 = scalar_lea.sflag [#allocation6], %s407
          %s409 = sand.u32 %s110, 1
          %s410 = scalar_lea.vmem [#allocation9], %s409
          %412 = dma.done %s408, 16
        $region64: #{tpu_custom_call.1} parent=59 // pred_fallthru
          _
      $region60: #{tpu_custom_call.1} parent=5 // pred_fallthru
        _
    $region6: #{tpu_custom_call.1} parent=1 // loop_footer
      %s19 = sadd.s32 1, %s15
    $region7: #{tpu_custom_call.1} parent=1 // loop_footer_branch
      %14 = sbr.rel target = $region3
    $region8: #{tpu_custom_call.1} parent=1 // loop_exit
      _
    %413 = vsyncpa [#allocation5], 1
    %s414 = scalar_lea.sflag [#allocation5], 1
    %415 = vsyncpa %s414, 1
    %416 = vsyncpa [#allocation8], 1
    %417 = vsyncpa [#allocation6], 1
    %s418 = scalar_lea.sflag [#allocation6], 1
    %419 = vsyncpa %s418, 1

</llo_original>
